<compile_context>
chip_gen: v5e
topology: v5e:2x2
jax: 0.10.0
libtpu: 0.0.40
codegen_flags: <defaults>
</compile_context>

<pallas_src>
import math
import functools

import jax
import jax.numpy as jnp
from jax import lax
from jax.experimental import pallas as pl
from jax.experimental.pallas import tpu as pltpu


D_MODEL = 32
MAX_LEN = 5000
DROPOUT_P = 0.1


def make_pe_table(d_model: int, max_len: int) -> jnp.ndarray:
    """Deterministic sinusoidal table, identical math to the torch __init__."""
    position = jnp.arange(0, max_len, dtype=jnp.float32)[:, None]           # (max_len, 1)
    div_term = jnp.exp(jnp.arange(0, d_model, 2, dtype=jnp.float32)
                       * (-math.log(10000.0) / d_model))                     # (d_model/2,)
    pe = jnp.zeros((max_len, d_model), dtype=jnp.float32)
    pe = pe.at[:, 0::2].set(jnp.sin(position * div_term))
    pe = pe.at[:, 1::2].set(jnp.cos(position * div_term))
    return pe                                                                # (max_len, d_model)


def _pos_enc_kernel(seed_ref, x_ref, pe_ref, o_ref, *,
                    p: float, training: bool, block_rows: int, row_len: int):
    # x_ref: (block_rows, S*D) lane-dense tile; pe_ref: (1, S*D) resident row.
    y = x_ref[...] + pe_ref[...]                      # sublane-broadcast add (VPU)

    if training and p > 0.0:
        # Stateless counter-based PRNG: murmur3 fmix32 of (global flat index,
        # seed).  Deterministic per element, independent of grid scheduling.
        # TODO(synk): RNG stream differs from torch.nn.Dropout, but the
        # Bernoulli(keep=1-p) + 1/(1-p) scaling semantics match (effective p is
        # within 2^-32 of the requested p due to the uint32 threshold).
        seed = seed_ref[0].astype(jnp.uint32)
        row0 = pl.program_id(0) * block_rows
        rows = (lax.broadcasted_iota(jnp.int32, y.shape, 0) + row0).astype(jnp.uint32)
        cols = lax.broadcasted_iota(jnp.int32, y.shape, 1).astype(jnp.uint32)
        h = rows * jnp.uint32(row_len) + cols + seed * jnp.uint32(0x9E3779B9)
        h = h ^ (h >> 16)
        h = h * jnp.uint32(0x85EBCA6B)
        h = h ^ (h >> 13)
        h = h * jnp.uint32(0xC2B2AE35)
        h = h ^ (h >> 16)
        threshold = jnp.uint32(int(p * float(2 ** 32)))       # drop iff h < threshold
        keep = (h >= threshold).astype(jnp.float32)
        y = y * (keep * jnp.float32(1.0 / (1.0 - p)))          # cvt + mul, no select

    o_ref[...] = y.astype(o_ref.dtype)


def positional_encoding(x, pe_table, seed, *, p=DROPOUT_P, training=True):
    """x: (B, S, D) float32; pe_table: (max_len, D); seed: python int."""
    B, S, D = x.shape
    SD = S * D

    # Lane-dense 2D views (glue; reshapes are layout-preserving).
    x2d = x.reshape(B, SD)
    pe2d = pe_table[:S, :].reshape(1, SD)
    seed_arr = jnp.asarray([seed], dtype=jnp.int32)

    # Row-block sizing: whole batch if small, else a multiple of 8 rows
    # targeting ~2 MiB per buffer (comfortable under v5e's 16 MiB scoped VMEM
    # and v7x's 64 MiB physical VMEM with double-buffered in/out + resident pe).
    target_bytes = 2 * 1024 * 1024
    rows_for_target = max(1, target_bytes // (SD * 4))
    if rows_for_target >= B:
        block_rows = B
    else:
        block_rows = max(8, (rows_for_target // 8) * 8)
    grid = (pl.cdiv(B, block_rows),)

    kernel = functools.partial(_pos_enc_kernel, p=p, training=training,
                               block_rows=block_rows, row_len=SD)

    out2d = pl.pallas_call(
        kernel,
        out_shape=jax.ShapeDtypeStruct((B, SD), x.dtype),
        grid_spec=pltpu.PrefetchScalarGridSpec(
            num_scalar_prefetch=1,
            grid=grid,
            in_specs=[
                pl.BlockSpec((block_rows, SD), lambda i, seed: (i, 0)),  # x rows
                pl.BlockSpec((1, SD), lambda i, seed: (0, 0)),           # pe (resident)
            ],
            out_specs=pl.BlockSpec((block_rows, SD), lambda i, seed: (i, 0)),
        ),
        compiler_params=pltpu.CompilerParams(
            # Stateless per-element hash -> grid steps independent; lets v7x
            # shard the row-blocks across both TensorCores.
            dimension_semantics=("parallel",),
        ),
        cost_estimate=pl.CostEstimate(
            flops=3 * B * SD,                       # add + dropout cvt/mul
            transcendentals=0,
            bytes_accessed=2 * B * SD * 4 + SD * 4,  # x read + out write + pe
        ),
    )(seed_arr, x2d, pe2d)

    return out2d.reshape(B, S, D)


if __name__ == "__main__":
    B, S, D = 2, 8, D_MODEL
    key = jax.random.PRNGKey(0)
    x = jax.random.normal(key, (B, S, D), dtype=jnp.float32)

    pe_table = make_pe_table(D_MODEL, MAX_LEN)

    # Eval-mode (dropout = identity): exact match against pure-JAX reference.
    out_eval = positional_encoding(x, pe_table, seed=0, training=False)
    jax.block_until_ready(out_eval)
    ref_eval = x + pe_table[:S, :][None, :, :]
    assert jnp.allclose(out_eval, ref_eval, atol=1e-6), "eval-mode mismatch"

    # Train-mode: every output element must be either 0 (dropped) or the
    # (x + pe) / (1 - p) scaled value (kept).
    out_train = positional_encoding(x, pe_table, seed=1234, training=True)
    jax.block_until_ready(out_train)
    assert out_train.shape == (B, S, D)
    scaled_ref = ref_eval / (1.0 - DROPOUT_P)
    is_zero = jnp.isclose(out_train, 0.0, atol=1e-7)
    is_kept = jnp.isclose(out_train, scaled_ref, atol=1e-5, rtol=1e-5)
    assert bool(jnp.all(is_zero | is_kept)), "train-mode values mismatch"
    drop_frac = float(jnp.mean(is_zero & ~is_kept))
    assert 0.0 < drop_frac < 0.5, f"implausible dropout fraction {drop_frac}"

    print("KERNEL_OK")
</pallas_src>

<mosaic_0001>
module attributes {stable_mosaic.version = 11 : i64} {
  func.func @_pos_enc_kernel(%arg0: i32, %arg1: memref<1xi32, #tpu.memory_space<smem>>, %arg2: memref<2x256xf32, #tpu.memory_space<vmem>>, %arg3: memref<1x256xf32, #tpu.memory_space<vmem>>, %arg4: memref<2x256xf32, #tpu.memory_space<vmem>>) attributes {dimension_semantics = [#tpu.dimension_semantics<parallel>], iteration_bounds = array<i64: 1>, scalar_prefetch = 1 : i64, scratch_operands = 0 : i64, tpu.core_type = #tpu.core_type<tc>, window_params = [{transform_indices = @transform_0, window_bounds = array<i64: 2, 256>}, {pipeline_mode = #tpu.pipeline_mode<synchronous>, transform_indices = @transform_1, window_bounds = array<i64: 1, 256>}, {transform_indices = @transform_2, window_bounds = array<i64: 2, 256>}]} {
    %c0 = arith.constant 0 : index
    %c0_0 = arith.constant 0 : index
    %0 = vector.load %arg2[%c0, %c0_0] : memref<2x256xf32, #tpu.memory_space<vmem>>, vector<2x256xf32>
    %c0_1 = arith.constant 0 : index
    %c0_2 = arith.constant 0 : index
    %1 = vector.load %arg3[%c0_1, %c0_2] : memref<1x256xf32, #tpu.memory_space<vmem>>, vector<1x256xf32>
    %2 = vector.broadcast %1 : vector<1x256xf32> to vector<2x256xf32>
    %3 = arith.addf %0, %2 : vector<2x256xf32>
    %c0_3 = arith.constant 0 : index
    %c0_4 = arith.constant 0 : index
    %4 = vector.load %arg4[%c0_3, %c0_4] : memref<2x256xf32, #tpu.memory_space<vmem>>, vector<2x256xf32>
    tpu.vector_store %arg4[%c0_3, %c0_4], %3 {strides = array<i32>} : memref<2x256xf32, #tpu.memory_space<vmem>>, vector<2x256xf32>,
    return
  }
  func.func @transform_0(%arg0: i32, %arg1: memref<1xi32, #tpu.memory_space<smem>>) -> (i32, i32) {
    %c0_i32 = arith.constant 0 : i32
    %c0_i32_0 = arith.constant 0 : i32
    return %arg0, %c0_i32 : i32, i32
  }
  func.func @transform_1(%arg0: i32, %arg1: memref<1xi32, #tpu.memory_space<smem>>) -> (i32, i32) {
    %c0_i32 = arith.constant 0 : i32
    %c0_i32_0 = arith.constant 0 : i32
    %c0_i32_1 = arith.constant 0 : i32
    return %c0_i32, %c0_i32_0 : i32, i32
  }
  func.func @transform_2(%arg0: i32, %arg1: memref<1xi32, #tpu.memory_space<smem>>) -> (i32, i32) {
    %c0_i32 = arith.constant 0 : i32
    %c0_i32_0 = arith.constant 0 : i32
    return %arg0, %c0_i32 : i32, i32
  }
}

</mosaic_0001>

<llo_original>
// kernel: tpu_custom_call.1
$region0: #{tpu_custom_call.1}
  #allocation0 [shape = 'u32[]', space=smem, size = 0x4, offset = 0x4, fixed_abs, tag = 'smem constant byte address 0x4 - core index']
  #allocation1 [shape = 'u32[72,128]{1,0:T(1,128)}', space=vmem, size = 0x9000, scoped, tag = 'internal scratch']
  #allocation2 [shape = 's32[1]{0}', space=sflag, size = 0x4, scoped, tag = 'scoped memory for tpu_custom_call.1']
  #allocation3 [shape = 's32[1]{0:T(128)S(6)}', space=smem, size = 0x200, scoped, tag = 'prefetched SMEM operand 0']
  %s0 = inlined_call_operand.<no memory space> [shape: s32[1], index: 0, kind: input, shape index: {}]
  %s1 = inlined_call_operand.hbm [shape: f32[2,256], index: 1, kind: input, shape index: {}]
  %s2 = inlined_call_operand.vmem [shape: f32[1,256], index: 2, kind: input, shape index: {}]
  %s3 = inlined_call_operand.hbm [shape: f32[2,256], index: 3, kind: output, shape index: {}]
  %s4 = sld [smem:[#allocation0]]
  $region22: #{tpu_custom_call.1} parent=0
    _
  %s6 = ssub.s32 1, %s4
  %s7 = scalar_select 0, %s6, %s4
  %8 = sst [smem:[#allocation3]] %s0
  $region1: #{tpu_custom_call.1} parent=0
    #allocation4 [shape = 'u8[2048]{0}', space=vmem, size = 0x800, scoped, tag = 'input window, operand 1, single buffered']
    #allocation5 [shape = 's32[1]{0}', space=sflag, size = 0x4, scoped, tag = 'scoped memory for tpu_custom_call.1']
    #allocation6 [shape = 's32[1]{0}', space=sflag, size = 0x4, scoped, tag = 'scoped memory for tpu_custom_call.1']
    #allocation7 [shape = 'u8[2048]{0}', space=vmem, size = 0x800, scoped, tag = 'output window, operand 0, single buffered']
    %9 = vsyncpa [#allocation5], 0
    %10 = vsyncpa [#allocation6], 0
    // Predicated region
    $region2: #{tpu_custom_call.1} parent=1 // pred_check
      _
    $region3: #{tpu_custom_call.1} parent=1 // pred_check_branch
      %12 = sbr.rel (0) target = $region5
    $region4: #{tpu_custom_call.1} parent=1 // pred_region
      %14 = vsyncadd [#allocation5], 0
      %s16 = sshll.u32 %s1, 4
      %s17 = int_to_ptr.hbm [resolvable:$true] %s16
      %s18 = sshll.u32 [#allocation4], 4
      %s19 = int_to_ptr.vmem [resolvable:$true] %s18
      %21 = dma.hbm_to_vmem [thread:$0]  %s17, 64, %s19, [#allocation5]
    $region5: #{tpu_custom_call.1} parent=1 // pred_fallthru
      _
    // Predicated region
    $region6: #{tpu_custom_call.1} parent=1 // pred_check
      _
    $region7: #{tpu_custom_call.1} parent=1 // pred_check_branch
      %23 = sbr.rel (0) target = $region9
    $region8: #{tpu_custom_call.1} parent=1 // pred_region
      _
    $region9: #{tpu_custom_call.1} parent=1 // pred_fallthru
      _
    // Predicated region
    $region10: #{tpu_custom_call.1} parent=1 // pred_check
      _
    $region11: #{tpu_custom_call.1} parent=1 // pred_check_branch
      %25 = sbr.rel (0) target = $region13
    $region12: #{tpu_custom_call.1} parent=1 // pred_region
      %27 = dma.done [#allocation5], 64
    $region13: #{tpu_custom_call.1} parent=1 // pred_fallthru
      _
    %v28 = vld [vmem:[#allocation4] sm:$0xf]
    %v29 = vld [vmem:[%s2] sm:$0x3]
    %v31 = vperm.slane %v29, 0
    %v32 = vperm.slane %v29, 1
    %v33 = vrot.slane %v32, 6
    %vm34 = vcmask 1041408
    %v35 = vsel %vm34, %v31, %v33
    %v37 = vadd.f32 %v28, %v35
    %38 = vst [vmem:[#allocation7] sm:$0xf] %v37
    // Predicated region
    $region14: #{tpu_custom_call.1} parent=1 // pred_check
      _
    $region15: #{tpu_custom_call.1} parent=1 // pred_check_branch
      %40 = sbr.rel (0) target = $region17
    $region16: #{tpu_custom_call.1} parent=1 // pred_region
      %42 = vsyncadd [#allocation6], 0
      %s44 = sshll.u32 [#allocation7], 4
      %s45 = int_to_ptr.vmem [resolvable:$true] %s44
      %s46 = sshll.u32 %s3, 4
      %s47 = int_to_ptr.hbm [resolvable:$true] %s46
      %49 = dma.vmem_to_hbm [thread:$0]  %s45, 64, %s47, [#allocation6]
    $region17: #{tpu_custom_call.1} parent=1 // pred_fallthru
      _
    // Predicated region
    $region18: #{tpu_custom_call.1} parent=1 // pred_check
      _
    $region19: #{tpu_custom_call.1} parent=1 // pred_check_branch
      %51 = sbr.rel (0) target = $region21
    $region20: #{tpu_custom_call.1} parent=1 // pred_region
      %53 = dma.done [#allocation6], 64
    $region21: #{tpu_custom_call.1} parent=1 // pred_fallthru
      _
    %54 = vsyncpa [#allocation5], 1
    %55 = vsyncpa [#allocation6], 1

</llo_original>
